<compile_context>
chip_gen: v6e
topology: v6e:2x2x1
jax: 0.10.0
libtpu: 0.0.40
codegen_flags: <defaults>
</compile_context>

<pallas_src>
import functools

import numpy as np
import jax
import jax.numpy as jnp
from jax.experimental import pallas as pl
from jax.experimental.pallas import tpu as pltpu

HIDDEN = 32    # hidden_size used in the demo
FEAT = 150     # fixed extra-feature width from the module definition
_MASK_BIG = 1e30
_OUT_W = 128   # lane-dense fused-weight / output width (>= 2*H + 2)


def _round_up(x, m):
    return ((x + m - 1) // m) * m


def _gat_fused_kernel(x_ref, w_ref, out_ref, *, tb, n, h):
    """One (branch, batch-block) per grid step.

    Block shapes:
      x_ref   (1, tb*n, C)   bf16; columns:
                 [0:h)        K rows
                 [h:h+F)      k-feature rows
                 h+F          masked logit offset (q.wQ + bias - (1-adj)*1e30)
                 h+F+1        sentence mask
                 rest         zero padding
      w_ref   (1, C, 128)    bf16 fused weight:
                 out cols [0:h)  = Wr0^T
                 out cols [h:2h) = Wr1^T
                 out col  2h     = attention column (wK | wkf | 1 | 0)
                 out col  2h+1   = s_mask passthrough (0 | 0 | 0 | 1)
      out_ref (1, tb, 1, 128) f32; cols [0:h) hold the result, rest zero.
    """
    # Single MXU pass producing [Wr0(K) | Wr1(K) | alpha | s_mask] for all rows.
    r = jnp.dot(x_ref[0], w_ref[0],
                preferred_element_type=jnp.float32)          # (tb*n, 128) f32

    smk = r[:, 2 * h + 1:2 * h + 2]                          # (tb*n, 1) 0/1
    v = r[:, 0:h] * smk + r[:, h:2 * h] * (1.0 - smk)        # gated value proj
    alpha = r[:, 2 * h:2 * h + 1]                            # masked logits

    # masked softmax over the n nodes of each item (deferred normalization);
    # only thin slices are reshaped -- never the full X block.
    a3 = alpha.reshape(tb, n, 1)
    e = jnp.exp(a3 - jnp.max(a3, axis=1, keepdims=True))     # (tb, n, 1)
    acc = jnp.sum(e * v.reshape(tb, n, h), axis=1)           # (tb, h)
    l = jnp.sum(e, axis=1)                                   # (tb, 1)
    res = acc * pl.reciprocal(l, approx=True)                # (tb, h)

    # lane-dense 128-wide store; wrapper slices [:, :h].
    out_w = out_ref.shape[-1]
    pad = jnp.zeros((tb, out_w - h), jnp.float32)
    out_ref[0] = jnp.concatenate([res, pad], axis=-1).reshape(tb, 1, out_w)


def _pick_tb(batch, n_pad, c, nb, block_budget_bytes=4 << 20):
    """Batch items per grid step.

    X block is bf16, so bytes/row = 2*c.  A ~4 MiB block double-buffers to
    ~8 MiB (+ ~0.1 MiB weights), fitting v5e's 16 MiB scoped-VMEM default and
    leaving headroom on v6e/v7x.  tb needs no sublane alignment (only
    tb*n_pad does, and n_pad is already a multiple of 16).  When only one
    branch is live, split the batch into >=2 blocks so both TensorCores of a
    megacore / v7x chip get work (extra grid step is ~0.35 us elsewhere).
    """
    rows = max(n_pad, block_budget_bytes // (2 * c))
    tb = max(1, min(batch, rows // n_pad))
    if nb == 1 and batch > 1:
        tb = min(tb, -(-batch // 2))          # at least 2 batch blocks
    return tb


def precompute_fused_weights(params, h=HIDDEN, feat=FEAT):
    """Hoisted (per-module, not per-call) construction of the fused weights."""
    c = _round_up(h + feat + 2, 128)
    assert 2 * h + 2 <= _OUT_W

    def one(w_full, bias, order):
        wf = w_full[0]
        if order == "front":                       # X_torch = [K, kf, Q]
            wK, wkf, wQ = wf[:h], wf[h:h + feat], wf[h + feat:]
        else:                                      # X_torch = [Q, kf, K]
            wQ, wkf, wK = wf[:h], wf[h:h + feat], wf[h + feat:]
        w = jnp.zeros((c, _OUT_W), jnp.float32)
        w = w.at[:h, :h].set(params["Wr0"].T)                 # value proj 0
        w = w.at[:h, h:2 * h].set(params["Wr1"].T)            # value proj 1
        w = w.at[:h, 2 * h].set(wK)                           # attention: K part
        w = w.at[h:h + feat, 2 * h].set(wkf)                  # attention: kf part
        w = w.at[h + feat, 2 * h].set(1.0)                    # logit-offset row
        w = w.at[h + feat + 1, 2 * h + 1].set(1.0)            # s_mask passthrough
        # rows >= h+feat+2 stay exactly zero so padding lanes never leak.
        return dict(w_fused=w.astype(jnp.bfloat16), wQ=wQ, bias=bias[0])

    return dict(
        front=one(params["front_linear_den_w"], params["front_linear_den_b"],
                  "front"),
        back=one(params["back_linear_den_w"], params["back_linear_den_b"],
                 "back"),
        c=c, h=h, feat=feat)


def _run_branches(branches, fused):
    """Run 1 or 2 GAT branches in a single fused pallas_call."""
    h, feat, c = fused["h"], fused["feat"], fused["c"]
    B, N, _ = branches[0]["K"].shape
    n_pad = _round_up(N, 16)                  # bf16 (16,128) tiling
    nb = len(branches)
    tb = _pick_tb(B, n_pad, c, nb)
    n_blocks = -(-B // tb)
    b_pad = n_blocks * tb

    xs, ws = [], []
    for br in branches:
        fw = fused[br["order"]]
        # Mask folded into the per-row logit offset (f32 math); padded node
        # rows get adj = 0 -> -1e30, so they drop out of the softmax.
        adj_p = jnp.pad(br["adj"].astype(jnp.float32),
                        ((0, 0), (0, n_pad - N)))
        off = br["Q"].astype(jnp.float32) @ fw["wQ"] + fw["bias"]       # (B,)
        logit_off = off[:, None] - (1.0 - adj_p) * _MASK_BIG            # (B, n_pad)

        pad_n3 = ((0, 0), (0, n_pad - N), (0, 0))
        x = jnp.concatenate(
            [jnp.pad(br["K"].astype(jnp.float32), pad_n3),
             jnp.pad(br["kf"].astype(jnp.float32), pad_n3),
             logit_off[..., None],
             jnp.pad(br["smask"].astype(jnp.float32),
                     ((0, 0), (0, n_pad - N)))[..., None]],
            axis=-1).astype(jnp.bfloat16)                 # (B, n_pad, h+feat+2)
        x = jnp.pad(x, ((0, b_pad - B), (0, 0), (0, c - x.shape[-1])))
        xs.append(x.reshape(b_pad * n_pad, c))
        ws.append(fw["w_fused"])

    x_all = jnp.stack(xs)                                 # (nb, b_pad*n_pad, c) bf16
    w_all = jnp.stack(ws)                                 # (nb, c, 128) bf16

    kernel = functools.partial(_gat_fused_kernel, tb=tb, n=n_pad, h=h)
    out = pl.pallas_call(
        kernel,
        out_shape=jax.ShapeDtypeStruct((nb, b_pad, 1, _OUT_W), jnp.float32),
        grid_spec=pltpu.PrefetchScalarGridSpec(
            num_scalar_prefetch=0,
            grid=(nb, n_blocks),
            in_specs=[
                pl.BlockSpec((1, tb * n_pad, c), lambda br, b: (br, b, 0)),
                pl.BlockSpec((1, c, _OUT_W), lambda br, b: (br, 0, 0)),
            ],
            out_specs=pl.BlockSpec((1, tb, 1, _OUT_W),
                                   lambda br, b: (br, b, 0, 0)),
        ),
        compiler_params=pltpu.CompilerParams(
            dimension_semantics=("parallel", "parallel"),
            # covers 2x (X block + weights + output) with headroom; <= the
            # scoped default on v6e/v7x and a safe raise above v5e's 16 MiB.
            vmem_limit_bytes=32 * 1024 * 1024),
    )(x_all, w_all)
    return [out[i, :B, 0, :h] for i in range(nb)]


def init_params(key, H, F_):
    """Deterministic PyTorch-style init (uniform +-1/sqrt(fan_in))."""
    ks = jax.random.split(key, 4)

    def lin(k, out_f, in_f):
        bound = 1.0 / np.sqrt(in_f)
        kw, kb = jax.random.split(k)
        w = jax.random.uniform(kw, (out_f, in_f), jnp.float32, -bound, bound)
        b = jax.random.uniform(kb, (out_f,), jnp.float32, -bound, bound)
        return w, b

    fw, fb = lin(ks[0], 1, 2 * H + F_)     # front_linear_den
    bw, bb = lin(ks[1], 1, 2 * H + F_)     # back_linear_den
    wr0, _ = lin(ks[2], H, H)              # Wr0 (bias=False)
    wr1, _ = lin(ks[3], H, H)              # Wr1 (bias=False)
    # linear2, linear3, front_k_liner, back_k_liner, grus_den1 are declared in
    # __init__ but never used in forward(), so they are omitted here.
    return dict(front_linear_den_w=fw, front_linear_den_b=fb,
                back_linear_den_w=bw, back_linear_den_b=bb,
                Wr0=wr0, Wr1=wr1)


def gat_dot_forward(params, i, num_utter, Q, K, V,
                    front_sdj_den, front_s_mask,
                    front_k1, front_k2, front_k3, front_k4,
                    back_K, back_V, back_sdj_den, back_s_mask,
                    back_k1, back_k2, back_k3, back_k4, fused=None):
    """Mirrors GatDot.forward.  i / num_utter are Python ints (as in torch)."""
    if fused is None:
        fused = precompute_fused_weights(params)   # prefer: build once, pass in
    branches = []
    if i != 0:
        branches.append(dict(order="front", K=K, kf=front_k1, Q=Q,
                             adj=front_sdj_den, smask=front_s_mask))
    if i != num_utter - 1:
        branches.append(dict(order="back", K=back_K, kf=back_k2, Q=Q,
                             adj=back_sdj_den, smask=back_s_mask))

    outs = _run_branches(branches, fused) if branches else []
    idx = 0
    if i != 0:
        front_sum, idx = outs[idx], idx + 1
    else:
        front_sum = jnp.zeros_like(Q)
    if i != num_utter - 1:
        back_sum, idx = outs[idx], idx + 1
    else:
        back_sum = jnp.zeros_like(Q)
    return front_sum, back_sum


# ---------------- pure-JAX reference (mirrors the torch code) ----------------
def _ref_branch(K, kfeat, Q, adj, smask, w_full, bias, Wr0, Wr1, order):
    B, N, H = K.shape
    Qe = jnp.broadcast_to(Q[:, None, :], (B, N, H))
    if order == "front":
        X = jnp.concatenate([K, kfeat, Qe], axis=2)
    else:
        X = jnp.concatenate([Qe, kfeat, K], axis=2)
    alpha = jnp.einsum("bnf,f->bn", X, w_full[0]) + bias[0]
    alpha = alpha - (1.0 - adj) * 1e30
    wgt = jax.nn.softmax(alpha, axis=-1)
    v0 = K @ Wr0.T
    v1 = K @ Wr1.T
    sm = smask[:, :, None]
    v = v0 * sm + v1 * (1.0 - sm)
    return jnp.einsum("bn,bnh->bh", wgt, v)


if __name__ == "__main__":
    H, F_ = HIDDEN, FEAT
    params = init_params(jax.random.PRNGKey(42), H, F_)
    fused = precompute_fused_weights(params)       # built once, reused per call

    # ---------- test 1: B=2, N=8, both branches active ----------
    B, N = 2, 8
    key = jax.random.PRNGKey(0)
    ks = jax.random.split(key, 12)

    Q = jax.random.normal(ks[0], (B, H), jnp.float32)
    K = jax.random.normal(ks[1], (B, N, H), jnp.float32)
    V = jax.random.normal(ks[2], (B, N, H), jnp.float32)          # unused (torch uses K)
    front_k1 = jax.random.normal(ks[3], (B, N, F_), jnp.float32)
    front_sdj = (jax.random.uniform(ks[4], (B, N)) > 0.3).astype(jnp.float32)
    front_sdj = front_sdj.at[:, 0].set(1.0)                        # keep rows non-empty
    front_s_mask = (jax.random.uniform(ks[5], (B, N)) > 0.5).astype(jnp.float32)

    back_K = jax.random.normal(ks[6], (B, N, H), jnp.float32)
    back_V = jax.random.normal(ks[7], (B, N, H), jnp.float32)      # unused (torch uses back_K)
    back_k2 = jax.random.normal(ks[8], (B, N, F_), jnp.float32)
    back_sdj = (jax.random.uniform(ks[9], (B, N)) > 0.3).astype(jnp.float32)
    back_sdj = back_sdj.at[:, 0].set(1.0)
    back_s_mask = (jax.random.uniform(ks[10], (B, N)) > 0.5).astype(jnp.float32)

    zeros_feat = jnp.zeros((B, N, F_), jnp.float32)

    front_sum, back_sum = gat_dot_forward(
        params, 1, 4, Q, K, V, front_sdj, front_s_mask,
        front_k1, zeros_feat, zeros_feat, zeros_feat,
        back_K, back_V, back_sdj, back_s_mask,
        zeros_feat, back_k2, zeros_feat, zeros_feat, fused=fused)
    jax.block_until_ready((front_sum, back_sum))

    ref_front = _ref_branch(K, front_k1, Q, front_sdj, front_s_mask,
                            params["front_linear_den_w"],
                            params["front_linear_den_b"],
                            params["Wr0"], params["Wr1"], "front")
    ref_back = _ref_branch(back_K, back_k2, Q, back_sdj, back_s_mask,
                           params["back_linear_den_w"],
                           params["back_linear_den_b"],
                           params["Wr0"], params["Wr1"], "back")
    # bf16-packed kernel vs f32 reference -> bf16-level tolerances.
    np.testing.assert_allclose(np.asarray(front_sum), np.asarray(ref_front),
                               rtol=3e-2, atol=3e-2)
    np.testing.assert_allclose(np.asarray(back_sum), np.asarray(ref_back),
                               rtol=3e-2, atol=3e-2)

    # ---------- test 2: B=3, N=5 (exercises N padding), i == 0 path ----------
    B2, N2 = 3, 5
    ks2 = jax.random.split(jax.random.PRNGKey(7), 8)
    Q2 = jax.random.normal(ks2[0], (B2, H), jnp.float32)
    K2 = jnp.zeros((B2, N2, H), jnp.float32)                       # front unused (i == 0)
    back_K2 = jax.random.normal(ks2[1], (B2, N2, H), jnp.float32)
    back_k2b = jax.random.normal(ks2[2], (B2, N2, F_), jnp.float32)
    back_sdj2 = (jax.random.uniform(ks2[3], (B2, N2)) > 0.3).astype(jnp.float32)
    back_sdj2 = back_sdj2.at[:, 0].set(1.0)
    back_s_mask2 = (jax.random.uniform(ks2[4], (B2, N2)) > 0.5).astype(jnp.float32)
    zf2 = jnp.zeros((B2, N2, F_), jnp.float32)
    zm2 = jnp.zeros((B2, N2), jnp.float32)

    f2, b2 = gat_dot_forward(
        params, 0, 4, Q2, K2, K2, zm2, zm2, zf2, zf2, zf2, zf2,
        back_K2, back_K2, back_sdj2, back_s_mask2, zf2, back_k2b, zf2, zf2,
        fused=fused)
    jax.block_until_ready((f2, b2))

    ref_back2 = _ref_branch(back_K2, back_k2b, Q2, back_sdj2, back_s_mask2,
                            params["back_linear_den_w"],
                            params["back_linear_den_b"],
                            params["Wr0"], params["Wr1"], "back")
    np.testing.assert_allclose(np.asarray(f2), np.zeros((B2, H), np.float32),
                               rtol=1e-6, atol=1e-6)
    np.testing.assert_allclose(np.asarray(b2), np.asarray(ref_back2),
                               rtol=3e-2, atol=3e-2)

    print("KERNEL_OK")
</pallas_src>

<mosaic_0001>
module attributes {stable_mosaic.version = 11 : i64} {
  func.func @_gat_fused_kernel(%arg0: i32, %arg1: i32, %arg2: memref<1x32x256xbf16, #tpu.memory_space<vmem>>, %arg3: memref<1x256x128xbf16, #tpu.memory_space<vmem>>, %arg4: memref<1x2x1x128xf32, #tpu.memory_space<vmem>>) attributes {dimension_semantics = [#tpu.dimension_semantics<parallel>, #tpu.dimension_semantics<parallel>], iteration_bounds = array<i64: 2, 1>, scalar_prefetch = 0 : i64, scratch_operands = 0 : i64, tpu.core_type = #tpu.core_type<tc>, window_params = [{transform_indices = @transform_0, window_bounds = array<i64: 1, 32, 256>}, {transform_indices = @transform_1, window_bounds = array<i64: 1, 256, 128>}, {transform_indices = @transform_2, window_bounds = array<i64: 1, 2, 1, 128>}]} {
    %c0 = arith.constant 0 : index
    %c0_0 = arith.constant 0 : index
    %c0_1 = arith.constant 0 : index
    %0 = vector.load %arg2[%c0, %c0_0, %c0_1] : memref<1x32x256xbf16, #tpu.memory_space<vmem>>, vector<1x32x256xbf16>
    %1 = vector.shape_cast %0 : vector<1x32x256xbf16> to vector<32x256xbf16>
    %c0_2 = arith.constant 0 : index
    %c0_3 = arith.constant 0 : index
    %c0_4 = arith.constant 0 : index
    %2 = vector.load %arg3[%c0_2, %c0_3, %c0_4] : memref<1x256x128xbf16, #tpu.memory_space<vmem>>, vector<1x256x128xbf16>
    %3 = vector.shape_cast %2 : vector<1x256x128xbf16> to vector<256x128xbf16>
    %cst = arith.constant dense<0.000000e+00> : vector<32x128xf32>
    %4 = tpu.matmul %1, %3, %cst {dimension_numbers = #tpu.dot_dimension_numbers<[1], [0], [0], [1], [0, 0, 1, 1], [], []>} : vector<32x256xbf16>, vector<256x128xbf16>, vector<32x128xf32> -> vector<32x128xf32>
    %5 = vector.extract_strided_slice %4 {offsets = [0, 65], sizes = [32, 1], strides = [1, 1]} : vector<32x128xf32> to vector<32x1xf32>
    %6 = vector.extract_strided_slice %4 {offsets = [0, 0], sizes = [32, 32], strides = [1, 1]} : vector<32x128xf32> to vector<32x32xf32>
    %7 = vector.broadcast %5 : vector<32x1xf32> to vector<32x32xf32>
    %8 = arith.mulf %6, %7 : vector<32x32xf32>
    %9 = vector.extract_strided_slice %4 {offsets = [0, 32], sizes = [32, 32], strides = [1, 1]} : vector<32x128xf32> to vector<32x32xf32>
    %cst_5 = arith.constant 1.000000e+00 : f32
    %10 = vector.broadcast %cst_5 : f32 to vector<32x1xf32>
    %11 = arith.subf %10, %5 : vector<32x1xf32>
    %12 = vector.broadcast %11 : vector<32x1xf32> to vector<32x32xf32>
    %13 = arith.mulf %9, %12 : vector<32x32xf32>
    %14 = arith.addf %8, %13 : vector<32x32xf32>
    %15 = vector.extract_strided_slice %4 {offsets = [0, 64], sizes = [32, 1], strides = [1, 1]} : vector<32x128xf32> to vector<32x1xf32>
    %16 = vector.shape_cast %15 : vector<32x1xf32> to vector<2x16x1xf32>
    %cst_6 = arith.constant dense<0xFF800000> : vector<2x1xf32>
    %17 = vector.multi_reduction <maximumf>, %16, %cst_6 [1] : vector<2x16x1xf32> to vector<2x1xf32>
    %18 = vector.shape_cast %17 : vector<2x1xf32> to vector<2x1x1xf32>
    %19 = vector.broadcast %18 : vector<2x1x1xf32> to vector<2x16x1xf32>
    %20 = arith.subf %16, %19 : vector<2x16x1xf32>
    %21 = math.exp %20 : vector<2x16x1xf32>
    %22 = vector.shape_cast %14 : vector<32x32xf32> to vector<2x16x32xf32>
    %23 = vector.broadcast %21 : vector<2x16x1xf32> to vector<2x16x32xf32>
    %24 = arith.mulf %23, %22 : vector<2x16x32xf32>
    %cst_7 = arith.constant dense<0.000000e+00> : vector<2x32xf32>
    %25 = vector.multi_reduction <add>, %24, %cst_7 [1] : vector<2x16x32xf32> to vector<2x32xf32>
    %cst_8 = arith.constant dense<0.000000e+00> : vector<2x1xf32>
    %26 = vector.multi_reduction <add>, %21, %cst_8 [1] : vector<2x16x1xf32> to vector<2x1xf32>
    %27 = tpu.reciprocal %26 {approx = true} : vector<2x1xf32> -> vector<2x1xf32>
    %28 = vector.broadcast %27 : vector<2x1xf32> to vector<2x32xf32>
    %29 = arith.mulf %25, %28 : vector<2x32xf32>
    %cst_9 = arith.constant 0.000000e+00 : f32
    %30 = vector.broadcast %cst_9 : f32 to vector<2x96xf32>
    %31 = tpu.concatenate %29, %30 in 1 : vector<2x32xf32>, vector<2x96xf32> -> vector<2x128xf32>
    %32 = vector.shape_cast %31 : vector<2x128xf32> to vector<2x1x128xf32>
    %c0_10 = arith.constant 0 : index
    %c0_11 = arith.constant 0 : index
    %c0_12 = arith.constant 0 : index
    %c0_13 = arith.constant 0 : index
    %33 = vector.load %arg4[%c0_10, %c0_11, %c0_12, %c0_13] : memref<1x2x1x128xf32, #tpu.memory_space<vmem>>, vector<1x2x1x128xf32>
    %34 = vector.shape_cast %33 : vector<1x2x1x128xf32> to vector<2x1x128xf32>
    %35 = vector.shape_cast %32 : vector<2x1x128xf32> to vector<1x2x1x128xf32>
    tpu.vector_store %arg4[%c0_10, %c0_11, %c0_12, %c0_13], %35 {strides = array<i32>} : memref<1x2x1x128xf32, #tpu.memory_space<vmem>>, vector<1x2x1x128xf32>,
    return
  }
  func.func @transform_0(%arg0: i32, %arg1: i32) -> (i32, i32, i32) {
    %c0_i32 = arith.constant 0 : i32
    %c0_i32_0 = arith.constant 0 : i32
    return %arg0, %arg1, %c0_i32 : i32, i32, i32
  }
  func.func @transform_1(%arg0: i32, %arg1: i32) -> (i32, i32, i32) {
    %c0_i32 = arith.constant 0 : i32
    %c0_i32_0 = arith.constant 0 : i32
    %c0_i32_1 = arith.constant 0 : i32
    return %arg0, %c0_i32, %c0_i32_0 : i32, i32, i32
  }
  func.func @transform_2(%arg0: i32, %arg1: i32) -> (i32, i32, i32, i32) {
    %c0_i32 = arith.constant 0 : i32
    %c0_i32_0 = arith.constant 0 : i32
    %c0_i32_1 = arith.constant 0 : i32
    return %arg0, %arg1, %c0_i32, %c0_i32_0 : i32, i32, i32, i32
  }
}

</mosaic_0001>

<llo_original>
// kernel: tpu_custom_call.1
$region0: #{tpu_custom_call.1}
  #allocation0 [shape = 'u32[]', space=smem, size = 0x4, offset = 0x4, fixed_abs, tag = 'smem constant byte address 0x4 - core index']
  #allocation1 [shape = 'u32[144,128]{1,0:T(1,128)}', space=vmem, size = 0x12000, scoped, tag = 'internal scratch']
  %s0 = inlined_call_operand.hbm [shape: bf16[2,32,256], index: 0, kind: input, shape index: {}]
  %s1 = inlined_call_operand.hbm [shape: bf16[2,256,128], index: 1, kind: input, shape index: {}]
  %s2 = inlined_call_operand.hbm [shape: f32[2,2,1,128], index: 2, kind: output, shape index: {}]
  %s3 = sld [smem:[#allocation0]]
  $region49: #{tpu_custom_call.1} parent=0
    _
  %s5 = ssub.s32 1, %s3
  %s6 = scalar_select 0, %s5, %s3
  $region1: #{tpu_custom_call.1} parent=0
    #allocation2 [shape = 'u8[32768]{0}', space=vmem, size = 0x8000, scoped, tag = 'input window, operand 0']
    #allocation3 [shape = 's32[2]{0}', space=sflag, size = 0x8, scoped, tag = 'scoped memory for tpu_custom_call.1']
    #allocation4 [shape = 's32[2]{0}', space=sflag, size = 0x8, scoped, tag = 'scoped memory for tpu_custom_call.1']
    #allocation5 [shape = 'u8[131072]{0}', space=vmem, size = 0x20000, scoped, tag = 'input window, operand 1']
    #allocation6 [shape = 's32[2]{0}', space=sflag, size = 0x8, scoped, tag = 'scoped memory for tpu_custom_call.1']
    #allocation7 [shape = 'u8[2048]{0}', space=vmem, size = 0x800, scoped, tag = 'output window, operand 0']
    %7 = vsyncpa [#allocation3], 0
    %s8 = scalar_lea.sflag [#allocation3], 1
    %9 = vsyncpa %s8, 0
    %10 = vsyncpa [#allocation6], 0
    %s11 = scalar_lea.sflag [#allocation6], 1
    %12 = vsyncpa %s11, 0
    %13 = vsyncpa [#allocation4], 0
    %s14 = scalar_lea.sflag [#allocation4], 1
    %15 = vsyncpa %s14, 0
    loop: start=0, step=1, limit=4
    $region2: #{tpu_custom_call.1} parent=1 // loop_pre_header
      _
    $region3: #{tpu_custom_call.1} parent=1 // loop_header
      %s17 = sphi 0, %s21
      %p18 = scmp.ge.s32.totalorder %s17, 4
      %s24 = sphi 0, %s36
      %s25 = sphi 0, %s32
      %s26 = sphi 0, %s24
      %s27 = sphi 0, %s25
      %s28 = sphi 0, %s26
      %s29 = sphi 0, %s27
      %s41 = sphi 0, %s43
      %s44 = sphi 0, %s41
      %s45 = sphi 0, %s44
      %s61 = sphi 0, %s45
      %s67 = sphi 0, %s69
      %s70 = sphi 0, %s67
      %s71 = sphi 0, %s70
      %s87 = sphi 0, %s71
      %s95 = sphi 0, %s97
      %s98 = sphi 0, %s95
      %s99 = sphi 0, %s98
      %s115 = sphi 0, %s99
    $region4: #{tpu_custom_call.1} parent=1 // loop_header_branch
      %20 = sbr.rel (%p18) target = $region8
    $region5: #{tpu_custom_call.1} parent=1 // loop_body
      %s22 = ssub.s32 %s17, 1
      %s23 = ssub.s32 %s17, 2
      %s30 = sadd.s32 1, %s25
      %p31 = scmp.ge.s32.totalorder %s30, 1
      %s32 = scalar_select %p31, 0, %s30
      %s33 = sadd.s32 1, %s24
      %s34 = scalar_select %p31, %s33, %s24
      %p35 = scmp.ge.s32.totalorder %s34, 2
      %s36 = scalar_select %p35, 0, %s34
      %s37 = ssub.s32 %s24, %s36
      %s38 = ssub.s32 %s25, %s32
      %s39 = sor.u32 %s37, %s38
      %p40 = scmp.eq.s32.totalorder %s39, 0
      %s42 = sadd.s32 %s41, 1
      %s43 = scalar_select %p40, %s41, %s42
      %p46 = pneg %p40
      %p47 = scmp.eq.s32.totalorder %s17, 1
      %p48 = por %p46, %p47
      %p49 = scmp.ne.s32.totalorder %s41, %s44
      %p50 = scmp.eq.s32.totalorder %s17, 0
      %p51 = por %p49, %p50
      %p52 = scmp.ne.s32.totalorder %s41, %s44
      %p53 = scmp.eq.s32.totalorder %s22, 1
      %p54 = por %p52, %p53
      %p55 = scmp.ne.s32.totalorder %s44, %s45
      %p56 = scmp.eq.s32.totalorder %s22, 0
      %p57 = por %p55, %p56
      %p58 = scmp.ne.s32.totalorder %s44, %s45
      %p59 = scmp.eq.s32.totalorder %s23, 1
      %p60 = por %p58, %p59
      %p62 = scmp.ne.s32.totalorder %s45, %s61
      %p63 = scmp.eq.s32.totalorder %s23, 0
      %p64 = por %p62, %p63
      %s65 = ssub.s32 %s24, %s36
      %p66 = scmp.eq.s32.totalorder %s65, 0
      %s68 = sadd.s32 %s67, 1
      %s69 = scalar_select %p66, %s67, %s68
      %p72 = pneg %p66
      %p73 = scmp.eq.s32.totalorder %s17, 1
      %p74 = por %p72, %p73
      %p75 = scmp.ne.s32.totalorder %s67, %s70
      %p76 = scmp.eq.s32.totalorder %s17, 0
      %p77 = por %p75, %p76
      %p78 = scmp.ne.s32.totalorder %s67, %s70
      %p79 = scmp.eq.s32.totalorder %s22, 1
      %p80 = por %p78, %p79
      %p81 = scmp.ne.s32.totalorder %s70, %s71
      %p82 = scmp.eq.s32.totalorder %s22, 0
      %p83 = por %p81, %p82
      %p84 = scmp.ne.s32.totalorder %s70, %s71
      %p85 = scmp.eq.s32.totalorder %s23, 1
      %p86 = por %p84, %p85
      %p88 = scmp.ne.s32.totalorder %s71, %s87
      %p89 = scmp.eq.s32.totalorder %s23, 0
      %p90 = por %p88, %p89
      %s91 = ssub.s32 %s24, %s36
      %s92 = ssub.s32 %s25, %s32
      %s93 = sor.u32 %s91, %s92
      %p94 = scmp.eq.s32.totalorder %s93, 0
      %s96 = sadd.s32 %s95, 1
      %s97 = scalar_select %p94, %s95, %s96
      %p100 = pneg %p94
      %p101 = scmp.eq.s32.totalorder %s17, 1
      %p102 = por %p100, %p101
      %p103 = scmp.ne.s32.totalorder %s95, %s98
      %p104 = scmp.eq.s32.totalorder %s17, 0
      %p105 = por %p103, %p104
      %p106 = scmp.ne.s32.totalorder %s95, %s98
      %p107 = scmp.eq.s32.totalorder %s22, 1
      %p108 = por %p106, %p107
      %p109 = scmp.ne.s32.totalorder %s98, %s99
      %p110 = scmp.eq.s32.totalorder %s22, 0
      %p111 = por %p109, %p110
      %p112 = scmp.ne.s32.totalorder %s98, %s99
      %p113 = scmp.eq.s32.totalorder %s23, 1
      %p114 = por %p112, %p113
      %p116 = scmp.ne.s32.totalorder %s99, %s115
      %p117 = scmp.eq.s32.totalorder %s23, 0
      %p118 = por %p116, %p117
      %p119 = scmp.le.s32.totalorder 1, %s17
      %p120 = scmp.lt.s32.totalorder %s17, 3
      %p121 = pnand %p119, %p120
      %p122 = pneg %p121
      // Predicated region
      $region9: #{tpu_custom_call.1} parent=5 // pred_check
        _
      $region10: #{tpu_custom_call.1} parent=5 // pred_check_branch
        %124 = sbr.rel (%p121) target = $region12
      $region11: #{tpu_custom_call.1} parent=5 // pred_region
        %s125 = ssub.s32 %s17, 1
      $region12: #{tpu_custom_call.1} parent=5 // pred_fallthru
        _
      %p126 = scmp.lt.s32.totalorder %s17, 2
      // Predicated region
      $region13: #{tpu_custom_call.1} parent=5 // pred_check
        %p127 = pneg %p126
      $region14: #{tpu_custom_call.1} parent=5 // pred_check_branch
        %129 = sbr.rel (%p127) target = $region16
      $region15: #{tpu_custom_call.1} parent=5 // pred_region
        // Predicated region
        $region17: #{tpu_custom_call.1} parent=15 // pred_check
          %p130 = pneg %p51
        $region18: #{tpu_custom_call.1} parent=15 // pred_check_branch
          %132 = sbr.rel (%p130) target = $region20
        $region19: #{tpu_custom_call.1} parent=15 // pred_region
          %s133 = sand.u32 %s41, 1
          %s134 = scalar_lea.sflag [#allocation3], %s133
          %s135 = sand.u32 %s41, 1
          %s136 = smul.addr %s135, 32
          %s137 = scalar_lea.vmem [#allocation2], %s136
          %s138 = smul.u32 4, %s25
          %s140 = ssub.s32 512, 512
          %141 = vsyncadd %s134, %s140
          %s142 = smul.addr %s138, 2
          %s143 = smul.addr %s24, 8
          %s144 = sadd.s32 %s142, %s143
          %s145 = smul.addr %s144, 64
          %s146 = scalar_lea.hbm %s0, %s145
          %s147 = sshll.u32 %s137, 4
          %s148 = int_to_ptr.vmem [resolvable:$true] %s147
          %153 = dma.hbm_to_vmem [thread:$0]  %s146, 512, %s148, %s134, 128, 128, 8
        $region20: #{tpu_custom_call.1} parent=15 // pred_fallthru
          _
        // Predicated region
        $region21: #{tpu_custom_call.1} parent=15 // pred_check
          %p154 = pneg %p77
        $region22: #{tpu_custom_call.1} parent=15 // pred_check_branch
          %156 = sbr.rel (%p154) target = $region24
        $region23: #{tpu_custom_call.1} parent=15 // pred_region
          %s157 = sand.u32 %s67, 1
          %s158 = scalar_lea.sflag [#allocation6], %s157
          %s159 = sand.u32 %s67, 1
          %s160 = smul.addr %s159, 128
          %s161 = scalar_lea.vmem [#allocation5], %s160
          %s163 = ssub.s32 2048, 2048
          %164 = vsyncadd %s158, %s163
          %s165 = smul.addr %s24, 32
          %s166 = smul.addr %s165, 64
          %s167 = scalar_lea.hbm %s1, %s166
          %s168 = sshll.u32 %s161, 4
          %s169 = int_to_ptr.vmem [resolvable:$true] %s168
          %174 = dma.hbm_to_vmem [thread:$0]  %s167, 2048, %s169, %s158, 64, 64, 4
        $region24: #{tpu_custom_call.1} parent=15 // pred_fallthru
          _
      $region16: #{tpu_custom_call.1} parent=5 // pred_fallthru
        _
      %p175 = scmp.le.s32.totalorder 1, %s17
      %p176 = scmp.lt.s32.totalorder %s17, 3
      %p177 = pnand %p175, %p176
      %p178 = pneg %p177
      // Predicated region
      $region25: #{tpu_custom_call.1} parent=5 // pred_check
        _
      $region26: #{tpu_custom_call.1} parent=5 // pred_check_branch
        %180 = sbr.rel (%p177) target = $region28
      $region27: #{tpu_custom_call.1} parent=5 // pred_region
        %s181 = ssub.s32 %s17, 1
        %s182 = sand.u32 %s44, 1
        %s183 = scalar_lea.sflag [#allocation3], %s182
        %s184 = sand.u32 %s44, 1
        %s185 = smul.addr %s184, 32
        %s186 = scalar_lea.vmem [#allocation2], %s185
        // Predicated region
        $region29: #{tpu_custom_call.1} parent=27 // pred_check
          %p187 = pneg %p57
        $region30: #{tpu_custom_call.1} parent=27 // pred_check_branch
          %189 = sbr.rel (%p187) target = $region32
        $region31: #{tpu_custom_call.1} parent=27 // pred_region
          %190 = dma.done %s183, 512
        $region32: #{tpu_custom_call.1} parent=27 // pred_fallthru
          _
        %s191 = sand.u32 %s70, 1
        %s192 = scalar_lea.sflag [#allocation6], %s191
        %s193 = sand.u32 %s70, 1
        %s194 = smul.addr %s193, 128
        %s195 = scalar_lea.vmem [#allocation5], %s194
        // Predicated region
        $region33: #{tpu_custom_call.1} parent=27 // pred_check
          %p196 = pneg %p83
        $region34: #{tpu_custom_call.1} parent=27 // pred_check_branch
          %198 = sbr.rel (%p196) target = $region36
        $region35: #{tpu_custom_call.1} parent=27 // pred_region
          %199 = dma.done %s192, 2048
        $region36: #{tpu_custom_call.1} parent=27 // pred_fallthru
          _
        %s200 = sand.u32 %s44, 1
        %s201 = scalar_lea.sflag [#allocation3], %s200
        %s202 = sand.u32 %s44, 1
        %s203 = smul.addr %s202, 32
        %s204 = scalar_lea.vmem [#allocation2], %s203
        %p205 = pneg %p57
        %p206 = pneg %p54
        %s207 = sand.u32 %s70, 1
        %s208 = scalar_lea.sflag [#allocation6], %s207
        %s209 = sand.u32 %s70, 1
        %s210 = smul.addr %s209, 128
        %s211 = scalar_lea.vmem [#allocation5], %s210
        %p212 = pneg %p83
        %p213 = pneg %p80
        %p214 = pneg %p111
        %p215 = pneg %p108
        %s216 = sand.u32 %s98, 1
        %s217 = scalar_lea.sflag [#allocation4], %s216
        %s218 = sand.u32 %s98, 1
        %s219 = smul.addr %s218, 2
        %s220 = scalar_lea.vmem [#allocation7], %s219
        %s221 = smul.u32 4, %s27
        %s222 = smul.u32 2, %s27
        %v224 = vld [vmem:[%s186] sm:$0xff]
        %v225 = vld [vmem:[%s186 + $0x8] sm:$0xff]
        %v226 = vld [vmem:[%s186 + $0x10] sm:$0xff]
        %v227 = vld [vmem:[%s186 + $0x18] sm:$0xff]
        %v228 = vld [vmem:[%s195] sm:$0xf]
        %v229 = vld [vmem:[%s195 + $0x4] sm:$0xf]
        %v230 = vld [vmem:[%s195 + $0x8] sm:$0xf]
        %v231 = vld [vmem:[%s195 + $0xc] sm:$0xf]
        %v232 = vld [vmem:[%s195 + $0x10] sm:$0xf]
        %v233 = vld [vmem:[%s195 + $0x14] sm:$0xf]
        %v234 = vld [vmem:[%s195 + $0x18] sm:$0xf]
        %v235 = vld [vmem:[%s195 + $0x1c] sm:$0xf]
        %v236 = vld [vmem:[%s195 + $0x20] sm:$0xf]
        %v237 = vld [vmem:[%s195 + $0x24] sm:$0xf]
        %v238 = vld [vmem:[%s195 + $0x28] sm:$0xf]
        %v239 = vld [vmem:[%s195 + $0x2c] sm:$0xf]
        %v240 = vld [vmem:[%s195 + $0x30] sm:$0xf]
        %v241 = vld [vmem:[%s195 + $0x34] sm:$0xf]
        %v242 = vld [vmem:[%s195 + $0x38] sm:$0xf]
        %v243 = vld [vmem:[%s195 + $0x3c] sm:$0xf]
        %v244 = vld [vmem:[%s195 + $0x40] sm:$0xf]
        %v245 = vld [vmem:[%s195 + $0x44] sm:$0xf]
        %v246 = vld [vmem:[%s195 + $0x48] sm:$0xf]
        %v247 = vld [vmem:[%s195 + $0x4c] sm:$0xf]
        %v248 = vld [vmem:[%s195 + $0x50] sm:$0xf]
        %v249 = vld [vmem:[%s195 + $0x54] sm:$0xf]
        %v250 = vld [vmem:[%s195 + $0x58] sm:$0xf]
        %v251 = vld [vmem:[%s195 + $0x5c] sm:$0xf]
        %v252 = vld [vmem:[%s195 + $0x60] sm:$0xf]
        %v253 = vld [vmem:[%s195 + $0x64] sm:$0xf]
        %v254 = vld [vmem:[%s195 + $0x68] sm:$0xf]
        %v255 = vld [vmem:[%s195 + $0x6c] sm:$0xf]
        %v256 = vld [vmem:[%s195 + $0x70] sm:$0xf]
        %v257 = vld [vmem:[%s195 + $0x74] sm:$0xf]
        %v258 = vld [vmem:[%s195 + $0x78] sm:$0xf]
        %v259 = vld [vmem:[%s195 + $0x7c] sm:$0xf]
        %v264 = vunpack.c.l.b16 %v224
        %v265 = vunpack.c.h.b16 %v224
        %v266 = vunpack.c.l.b16 %v225
        %v267 = vunpack.c.h.b16 %v225
        %v268 = vunpack.c.l.b16 %v226
        %v269 = vunpack.c.h.b16 %v226
        %v270 = vunpack.c.l.b16 %v227
        %v271 = vunpack.c.h.b16 %v227
        %v272 = vpack.c.b16 %v266, %v264
        %v273 = vpack.c.b16 %v267, %v265
        %v274 = vpack.c.b16 %v270, %v268
        %v275 = vpack.c.b16 %v271, %v269
        %v312 = vunpack.c.l.b16 %v228
        %v313 = vunpack.c.l.b16 %v229
        %v314 = vunpack.c.l.b16 %v230
        %v315 = vunpack.c.l.b16 %v231
        %v316 = vunpack.c.l.b16 %v232
        %v317 = vunpack.c.l.b16 %v233
        %v318 = vunpack.c.l.b16 %v234
        %v319 = vunpack.c.l.b16 %v235
        %v320 = vunpack.c.l.b16 %v236
        %v321 = vunpack.c.l.b16 %v237
        %v322 = vunpack.c.l.b16 %v238
        %v323 = vunpack.c.l.b16 %v239
        %v324 = vunpack.c.l.b16 %v240
        %v325 = vunpack.c.l.b16 %v241
        %v326 = vunpack.c.l.b16 %v242
        %v327 = vunpack.c.l.b16 %v243
        %v328 = vunpack.c.l.b16 %v244
        %v329 = vunpack.c.l.b16 %v245
        %v330 = vunpack.c.l.b16 %v246
        %v331 = vunpack.c.l.b16 %v247
        %v332 = vunpack.c.l.b16 %v248
        %v333 = vunpack.c.l.b16 %v249
        %v334 = vunpack.c.l.b16 %v250
        %v335 = vunpack.c.l.b16 %v251
        %v336 = vunpack.c.l.b16 %v252
        %v337 = vunpack.c.l.b16 %v253
        %v338 = vunpack.c.l.b16 %v254
        %v339 = vunpack.c.l.b16 %v255
        %v340 = vunpack.c.l.b16 %v256
        %v341 = vunpack.c.l.b16 %v257
        %v342 = vunpack.c.l.b16 %v258
        %v343 = vunpack.c.l.b16 %v259
        %v344 = vpack.c.b16 %v313, %v312
        %v345 = vpack.c.b16 %v315, %v314
        %v346 = vpack.c.b16 %v317, %v316
        %v347 = vpack.c.b16 %v319, %v318
        %v348 = vpack.c.b16 %v321, %v320
        %v349 = vpack.c.b16 %v323, %v322
        %v350 = vpack.c.b16 %v325, %v324
        %v351 = vpack.c.b16 %v327, %v326
        %v352 = vpack.c.b16 %v329, %v328
        %v353 = vpack.c.b16 %v331, %v330
        %v354 = vpack.c.b16 %v333, %v332
        %v355 = vpack.c.b16 %v335, %v334
        %v356 = vpack.c.b16 %v337, %v336
        %v357 = vpack.c.b16 %v339, %v338
        %v358 = vpack.c.b16 %v341, %v340
        %v359 = vpack.c.b16 %v343, %v342
        %376 = vmatprep.subr.bf16.mxu0 0
        %377 = vmatpush1.bf16.msra.mxu0 %v351
        %378 = vmatprep.subr.bf16.mxu0 0
        %379 = vmatpush1.bf16.msra.mxu0 %v350
        %380 = vmatprep.subr.bf16.mxu0 0
        %381 = vmatpush1.bf16.msra.mxu0 %v349
        %382 = vmatprep.subr.bf16.mxu0 0
        %383 = vmatpush1.bf16.msra.mxu0 %v348
        %384 = vmatprep.subr.bf16.mxu0 0
        %385 = vmatpush1.bf16.msra.mxu0 %v347
        %386 = vmatprep.subr.bf16.mxu0 0
        %387 = vmatpush1.bf16.msra.mxu0 %v346
        %388 = vmatprep.subr.bf16.mxu0 0
        %389 = vmatpush1.bf16.msra.mxu0 %v345
        %390 = vmatprep.subr.bf16.mxu0 0
        %391 = vmatpush1.bf16.msra.mxu0 %v344
        %392 = vmatprep.subr.bf16.mxu0 0
        %393 = vmatpush2.bf16.msra.mxu0 %v359
        %394 = vmatprep.subr.bf16.mxu0 0
        %395 = vmatpush2.bf16.msra.mxu0 %v358
        %396 = vmatprep.subr.bf16.mxu0 0
        %397 = vmatpush2.bf16.msra.mxu0 %v357
        %398 = vmatprep.subr.bf16.mxu0 0
        %399 = vmatpush2.bf16.msra.mxu0 %v356
        %400 = vmatprep.subr.bf16.mxu0 0
        %401 = vmatpush2.bf16.msra.mxu0 %v355
        %402 = vmatprep.subr.bf16.mxu0 0
        %403 = vmatpush2.bf16.msra.mxu0 %v354
        %404 = vmatprep.subr.bf16.mxu0 0
        %405 = vmatpush2.bf16.msra.mxu0 %v353
        %406 = vmatprep.subr.bf16.mxu0 0
        %407 = vmatpush2.bf16.msra.mxu0 %v352
        %408 = vmatprep.mubr.bf16.mxu0 %v273
        %409 = vmatmul.mubr.bf16.gmra.mxu0 %v272
        %v410 = vpop.f32.mrf.mxu0
        %v411 = vadd.f32 0.0, %v410
        %v412 = vpop.f32.mrf.mxu0
        %v413 = vpop.f32.mrf.mxu0
        %v414 = vadd.f32 0.0, %v413
        %v415 = vpop.f32.mrf.mxu0
        %416 = vmatprep.mubr.bf16.mxu0 %v275
        %417 = vmatmul.mubr.bf16.gmra.mxu0 %v274
        %v418 = vpop.f32.mrf.mxu0
        %v419 = vadd.f32 0.0, %v418
        %v420 = vpop.f32.mrf.mxu0
        %v421 = vpop.f32.mrf.mxu0
        %v422 = vadd.f32 0.0, %v421
        %v423 = vpop.f32.mrf.mxu0
        %424 = vdwg.mxu0
        %426 = vset.pattern.permute.xlu0 65
        %427 = vperm.xlu0 %426, %v411
        %v428 = vpop.permute.xlu0 %427
        %431 = vset.pattern.permute.xlu0 65
        %432 = vperm.xlu0 %431, %v414
        %v433 = vpop.permute.xlu0 %432
        %436 = vset.pattern.permute.xlu0 65
        %437 = vperm.xlu0 %436, %v419
        %v438 = vpop.permute.xlu0 %437
        %441 = vset.pattern.permute.xlu0 65
        %442 = vperm.xlu0 %441, %v422
        %v443 = vpop.permute.xlu0 %442
        %v445 = vmul.f32 %v411, %v428
        %v446 = vmul.f32 %v414, %v433
        %v447 = vmul.f32 %v419, %v438
        %v448 = vmul.f32 %v422, %v443
        %v449 = vsub.f32 1.0, %v411
        %v450 = vsub.f32 1.0, %v414
        %v451 = vsub.f32 1.0, %v419
        %v452 = vsub.f32 1.0, %v422
        %454 = vset.pattern.permute.xlu0 65
        %455 = vperm.xlu0 %454, %v449
        %v456 = vpop.permute.xlu0 %455
        %459 = vset.pattern.permute.xlu0 65
        %460 = vperm.xlu0 %459, %v450
        %v461 = vpop.permute.xlu0 %460
        %464 = vset.pattern.permute.xlu0 65
        %465 = vperm.xlu0 %464, %v451
        %v466 = vpop.permute.xlu0 %465
        %469 = vset.pattern.permute.xlu0 65
        %470 = vperm.xlu0 %469, %v452
        %v471 = vpop.permute.xlu0 %470
        %v473 = vmul.f32 %v411, %v456
        %v474 = vmul.f32 %v414, %v461
        %v475 = vmul.f32 %v419, %v466
        %v476 = vmul.f32 %v422, %v471
        %481 = vrot.lane.b32.xlu0 %v473, 96
        %v482 = vpop.permute.xlu0 %481
        %483 = vrot.lane.b32.xlu0 %v474, 96
        %v484 = vpop.permute.xlu0 %483
        %485 = vrot.lane.b32.xlu0 %v475, 96
        %v486 = vpop.permute.xlu0 %485
        %487 = vrot.lane.b32.xlu0 %v476, 96
        %v488 = vpop.permute.xlu0 %487
        %v493 = vadd.f32 %v445, %v482
        %v494 = vadd.f32 %v446, %v484
        %v495 = vadd.f32 %v447, %v486
        %v496 = vadd.f32 %v448, %v488
        %vm497 = vcmask 531968
        %v498 = vsel %vm497, %v411, -inf
        %v499 = vsel %vm497, %v414, -inf
        %v500 = vmax.f32 %v498, %v499
        %v501 = vrot.slane %v500, 4
        %v502 = vmax.f32 %v500, %v501
        %v503 = vrot.slane %v502, 2
        %v504 = vmax.f32 %v502, %v503
        %v505 = vrot.slane %v504, 1
        %v506 = vmax.f32 %v504, %v505
        %v507 = vsel %vm497, %v419, -inf
        %v508 = vsel %vm497, %v422, -inf
        %v509 = vmax.f32 %v507, %v508
        %v510 = vrot.slane %v509, 4
        %v511 = vmax.f32 %v509, %v510
        %v512 = vrot.slane %v511, 2
        %v513 = vmax.f32 %v511, %v512
        %v514 = vrot.slane %v513, 1
        %v515 = vmax.f32 %v513, %v514
        %v516 = vsub.f32 %v411, %v506
        %v517 = vsub.f32 %v414, %v506
        %v518 = vsub.f32 %v419, %v515
        %v519 = vsub.f32 %v422, %v515
        %v520 = vmul.f32 %v516, 1.442695
        %v521 = vpow.pop %v520
        %v522 = vmul.f32 %v517, 1.442695
        %v523 = vpow.pop %v522
        %v524 = vmul.f32 %v518, 1.442695
        %v525 = vpow.pop %v524
        %v526 = vmul.f32 %v519, 1.442695
        %v527 = vpow.pop %v526
        %529 = vset.pattern.permute.xlu0 64
        %530 = vperm.xlu0 %529, %v521
        %v531 = vpop.permute.xlu0 %530
        %534 = vset.pattern.permute.xlu0 64
        %535 = vperm.xlu0 %534, %v523
        %v536 = vpop.permute.xlu0 %535
        %539 = vset.pattern.permute.xlu0 64
        %540 = vperm.xlu0 %539, %v525
        %v541 = vpop.permute.xlu0 %540
        %544 = vset.pattern.permute.xlu0 64
        %545 = vperm.xlu0 %544, %v527
        %v546 = vpop.permute.xlu0 %545
        %v548 = vmul.f32 %v531, %v493
        %v549 = vmul.f32 %v536, %v494
        %v550 = vmul.f32 %v541, %v495
        %v551 = vmul.f32 %v546, %v496
        %vm552 = vcmask 261120
        %v553 = vsel %vm552, %v548, 0.0
        %v554 = vsel %vm552, %v549, 0.0
        %v555 = vadd.f32 %v553, %v554
        %v556 = vrot.slane %v555, 4
        %v557 = vadd.f32 %v555, %v556
        %v558 = vrot.slane %v557, 2
        %v559 = vadd.f32 %v557, %v558
        %v560 = vrot.slane %v559, 1
        %v561 = vadd.f32 %v559, %v560
        %v562 = vsel %vm552, %v550, 0.0
        %v563 = vsel %vm552, %v551, 0.0
        %v564 = vadd.f32 %v562, %v563
        %v565 = vrot.slane %v564, 4
        %v566 = vadd.f32 %v564, %v565
        %v567 = vrot.slane %v566, 2
        %v568 = vadd.f32 %v566, %v567
        %v569 = vrot.slane %v568, 1
        %v570 = vadd.f32 %v568, %v569
        %v571 = vsel %vm497, %v521, 0.0
        %v572 = vsel %vm497, %v523, 0.0
        %v573 = vadd.f32 %v571, %v572
        %v574 = vrot.slane %v573, 4
        %v575 = vadd.f32 %v573, %v574
        %v576 = vrot.slane %v575, 2
        %v577 = vadd.f32 %v575, %v576
        %v578 = vrot.slane %v577, 1
        %v579 = vadd.f32 %v577, %v578
        %v580 = vsel %vm497, %v525, 0.0
        %v581 = vsel %vm497, %v527, 0.0
        %v582 = vadd.f32 %v580, %v581
        %v583 = vrot.slane %v582, 4
        %v584 = vadd.f32 %v582, %v583
        %v585 = vrot.slane %v584, 2
        %v586 = vadd.f32 %v584, %v585
        %v587 = vrot.slane %v586, 1
        %v588 = vadd.f32 %v586, %v587
        %v589 = vrcp.pop %v579
        %v590 = vrcp.pop %v588
        %592 = vset.pattern.permute.xlu0 64
        %593 = vperm.xlu0 %592, %v589
        %v594 = vpop.permute.xlu0 %593
        %597 = vset.pattern.permute.xlu0 64
        %598 = vperm.xlu0 %597, %v590
        %v599 = vpop.permute.xlu0 %598
        %v601 = vmul.f32 %v561, %v594
        %v602 = vmul.f32 %v570, %v599
        %vm605 = vcmask 1041409
        %v606 = vsel %vm605, %v602, %v601
        %v608 = vsel %vm552, %v606, 0.0
        %v611 = vunpack.c.l.s4 1966171168
        %v612 = vunpack.c.0.s8 %v611
        %v613 = vlaneseq
        %v614 = vshrl.u32 %v613, 7
        %v615 = vsub.s32 %v612, %v614
        %v616 = vrot.slane %v608, %v615
        %v617 = vcombine.high %v616, %v616
        %v619 = vunpack.c.l.s4 1966171168
        %v620 = vunpack.c.0.s8 %v619
        %v621 = vlaneseq
        %v622 = vshrl.u32 %v621, 7
        %v623 = vsub.s32 %v620, %v622
        %v624 = vrot.slane %v616, %v623
        %v626 = vunpack.c.l.s4 1966171168
        %v627 = vunpack.c.0.s8 %v626
        %v628 = vlaneseq
        %v629 = vshrl.u32 %v628, 7
        %v630 = vsub.s32 %v627, %v629
        %v631 = vrot.slane %v617, %v630
        %634 = vst [vmem:[%s220] sm:$0x1] %v624
        %635 = vst [vmem:[%s220 + $0x1] sm:$0x1] %v631
        %s636 = sand.u32 %s98, 1
        %s637 = scalar_lea.sflag [#allocation4], %s636
        %s638 = sand.u32 %s98, 1
        %s639 = smul.addr %s638, 2
        %s640 = scalar_lea.vmem [#allocation7], %s639
        // Predicated region
        $region37: #{tpu_custom_call.1} parent=27 // pred_check
          %p641 = pneg %p108
        $region38: #{tpu_custom_call.1} parent=27 // pred_check_branch
          %643 = sbr.rel (%p641) target = $region40
        $region39: #{tpu_custom_call.1} parent=27 // pred_region
          %s644 = smul.u32 2, %s27
          %s646 = ssub.s32 32, 32
          %647 = vsyncadd %s637, %s646
          %s648 = smul.addr %s26, 2
          %s649 = sadd.s32 %s644, %s648
          %s650 = smul.addr %s649, 16
          %s651 = scalar_lea.hbm %s2, %s650
          %s652 = sshll.u32 %s640, 4
          %s653 = int_to_ptr.vmem [resolvable:$true] %s652
          %658 = dma.vmem_to_hbm [thread:$0]  %s653, 32, %s651, %s637, 16, 16, 1
        $region40: #{tpu_custom_call.1} parent=27 // pred_fallthru
          _
      $region28: #{tpu_custom_call.1} parent=5 // pred_fallthru
        _
      %p659 = scmp.le.s32.totalorder 2, %s17
      // Predicated region
      $region41: #{tpu_custom_call.1} parent=5 // pred_check
        %p660 = pneg %p659
      $region42: #{tpu_custom_call.1} parent=5 // pred_check_branch
        %662 = sbr.rel (%p660) target = $region44
      $region43: #{tpu_custom_call.1} parent=5 // pred_region
        %s663 = ssub.s32 %s17, 2
        // Predicated region
        $region45: #{tpu_custom_call.1} parent=43 // pred_check
          %p664 = pneg %p114
        $region46: #{tpu_custom_call.1} parent=43 // pred_check_branch
          %666 = sbr.rel (%p664) target = $region48
        $region47: #{tpu_custom_call.1} parent=43 // pred_region
          %s667 = sand.u32 %s99, 1
          %s668 = scalar_lea.sflag [#allocation4], %s667
          %s669 = sand.u32 %s99, 1
          %s670 = smul.addr %s669, 2
          %s671 = scalar_lea.vmem [#allocation7], %s670
          %672 = dma.done %s668, 32
        $region48: #{tpu_custom_call.1} parent=43 // pred_fallthru
          _
      $region44: #{tpu_custom_call.1} parent=5 // pred_fallthru
        _
    $region6: #{tpu_custom_call.1} parent=1 // loop_footer
      %s21 = sadd.s32 1, %s17
    $region7: #{tpu_custom_call.1} parent=1 // loop_footer_branch
      %16 = sbr.rel target = $region3
    $region8: #{tpu_custom_call.1} parent=1 // loop_exit
      _
    %673 = vsyncpa [#allocation3], 1
    %s674 = scalar_lea.sflag [#allocation3], 1
    %675 = vsyncpa %s674, 1
    %676 = vsyncpa [#allocation6], 1
    %s677 = scalar_lea.sflag [#allocation6], 1
    %678 = vsyncpa %s677, 1
    %679 = vsyncpa [#allocation4], 1
    %s680 = scalar_lea.sflag [#allocation4], 1
    %681 = vsyncpa %s680, 1

</llo_original>
